<compile_context>
chip_gen: v7x
topology: tpu7x:2x2x1
jax: 0.10.0
libtpu: 0.0.40
codegen_flags: <defaults>
</compile_context>

<pallas_src>
import jax
import jax.numpy as jnp
from jax.experimental import pallas as pl
from jax.experimental.pallas import tpu as pltpu

LANE = 128  # TPU vreg lane width


def _round_up(v, m):
    return (v + m - 1) // m * m


def _fgcn1_fused_kernel(x_ref, adj_ref, w1_ref, b1_ref, w2_ref, b2_ref, o_ref):
    """Fused 2-layer GCN.

    x_ref  : (N, F_in)   f32   (cast to bf16 in-kernel for the feature matmul)
    adj_ref: (N, N)      f32   (kept f32 -> no double re-quantization error)
    w1_ref : (F_in, H)   bf16
    b1_ref : (1, H)      f32
    w2_ref : (H, F_out_p)bf16  (columns zero-padded to 128 at init)
    b2_ref : (1, F_out_p)f32
    o_ref  : (N, F_out_p)f32   (lane-dense store; real cols sliced by wrapper)

    layer1: h   = relu(adj @ (x @ w1) + b1)
    layer2: out = adj @ (h @ w2) + b2
    """
    adj = adj_ref[...]                                   # (N, N) f32, loaded once

    # ---- layer 1 ----
    x_bf = x_ref[...].astype(w1_ref.dtype)               # in-kernel cast (VPU filler)
    s1 = jnp.dot(x_bf, w1_ref[...],
                 preferred_element_type=jnp.float32)     # (N, H) f32 acc
    h = jnp.dot(adj, s1, preferred_element_type=jnp.float32)
    h = jnp.maximum(h + b1_ref[...], 0.0)                # bias + relu in f32

    # dropout: eval-mode -> identity

    # ---- layer 2 ----
    s2 = jnp.dot(h.astype(w2_ref.dtype), w2_ref[...],
                 preferred_element_type=jnp.float32)     # (N, F_out_p) f32 acc
    out = jnp.dot(adj, s2, preferred_element_type=jnp.float32)
    o_ref[...] = (out + b2_ref[...]).astype(o_ref.dtype)


def prepare_fgcn1_params(params, *, weight_dtype=jnp.bfloat16):
    """One-time parameter prep: bf16 weight casts + output-lane padding.

    Call once (e.g. at model init / load); fgcn1_forward then has zero
    per-call wrapper HLOs on the parameters.
    """
    (w1, b1), (w2, b2) = params
    f_in, nhid = w1.shape
    nhid2 = w2.shape[1]
    fp_out = _round_up(nhid2, LANE)

    w1_c = jnp.asarray(w1, jnp.float32).astype(weight_dtype)          # (F_in, H)
    b1_c = jnp.asarray(b1, jnp.float32).reshape(1, nhid)              # (1, H)
    # Pad only the output feature dim (lane-dense final store). Padded weight
    # columns and bias entries are zero, so the extra lanes are exactly zero.
    w2_p = (jnp.zeros((nhid, fp_out), jnp.float32)
            .at[:, :nhid2].set(w2).astype(weight_dtype))              # (H, 128)
    b2_p = jnp.zeros((1, fp_out), jnp.float32).at[0, :nhid2].set(b2)  # (1, 128)

    return dict(w1=w1_c, b1=b1_c, w2=w2_p, b2=b2_p,
                f_in=f_in, nhid=nhid, nhid2=nhid2, fp_out=fp_out)


def fgcn1_forward(x, adj, prepped):
    """FGCN1.forward(drug_graph=adj, drug_sim_feat=x) -> (N, nhid2)."""
    n, f_in = x.shape
    assert f_in == prepped["f_in"]
    nhid, nhid2, fp_out = prepped["nhid"], prepped["nhid2"], prepped["fp_out"]

    x_f32 = jnp.asarray(x, jnp.float32)
    adj_f32 = jnp.asarray(adj, jnp.float32)

    # Cost estimate from the REAL (unpadded) dims.
    flops = (2 * n * f_in * nhid + 2 * n * n * nhid          # layer 1
             + 2 * n * nhid * nhid2 + 2 * n * n * nhid2)     # layer 2
    bytes_accessed = (
        n * f_in * 4            # x
        + n * n * 4             # adj
        + f_in * nhid * 2       # w1 (bf16)
        + nhid * 4              # b1
        + nhid * nhid2 * 2      # w2 (real cols, bf16)
        + nhid2 * 4             # b2
        + n * nhid2 * 4)        # out

    vmem_spec = pl.BlockSpec(memory_space=pltpu.MemorySpace.VMEM)

    out_p = pl.pallas_call(
        _fgcn1_fused_kernel,
        out_shape=jax.ShapeDtypeStruct((n, fp_out), jnp.float32),
        in_specs=[vmem_spec] * 6,
        out_specs=vmem_spec,
        cost_estimate=pl.CostEstimate(
            flops=flops, transcendentals=0, bytes_accessed=bytes_accessed),
    )(x_f32, adj_f32, prepped["w1"], prepped["b1"], prepped["w2"], prepped["b2"])

    return out_p[:, :nhid2]


def init_gcn_params(key, features, nhid, nhid2):
    """Matches GraphConvolution2.reset_parameters:
    uniform(-stdv, stdv) with stdv = 1/sqrt(out_features)."""
    k1, k2, k3, k4 = jax.random.split(key, 4)
    stdv1 = 1.0 / jnp.sqrt(jnp.float32(nhid))
    stdv2 = 1.0 / jnp.sqrt(jnp.float32(nhid2))
    w1 = jax.random.uniform(k1, (features, nhid), jnp.float32, -stdv1, stdv1)
    b1 = jax.random.uniform(k2, (nhid,), jnp.float32, -stdv1, stdv1)
    w2 = jax.random.uniform(k3, (nhid, nhid2), jnp.float32, -stdv2, stdv2)
    b2 = jax.random.uniform(k4, (nhid2,), jnp.float32, -stdv2, stdv2)
    return (w1, b1), (w2, b2)


if __name__ == "__main__":
    # Small shapes: N=64 nodes, features=32, nhid=32, nhid2=16
    N, FEATURES, NHID, NHID2 = 64, 32, 32, 16
    DROPOUT = 0.5  # unused at inference

    key = jax.random.PRNGKey(0)
    kx, kadj, kparams = jax.random.split(key, 3)

    x = jax.random.normal(kx, (N, FEATURES), dtype=jnp.float32)

    # Symmetric row-normalized adjacency with self loops (typical GCN input).
    a = (jax.random.uniform(kadj, (N, N)) < 0.1).astype(jnp.float32)
    a = jnp.maximum(a, a.T) + jnp.eye(N, dtype=jnp.float32)
    adj = a / jnp.sum(a, axis=1, keepdims=True)

    params = init_gcn_params(kparams, FEATURES, NHID, NHID2)
    prepped = prepare_fgcn1_params(params)          # one-time prep (pad + bf16)

    out = fgcn1_forward(x, adj, prepped)
    jax.block_until_ready(out)

    # Reference in plain f32 JAX (same math, same params). Only the weights /
    # feature-matmul operands are bf16 in the kernel (adj stays f32), so the
    # tolerance can be moderately tight.
    (w1, b1), (w2, b2) = params
    ref = jnp.maximum(adj @ (x @ w1) + b1, 0.0)
    ref = adj @ (ref @ w2) + b2
    assert out.shape == (N, NHID2)
    assert jnp.allclose(out, ref, atol=2e-2, rtol=2e-2), (
        float(jnp.max(jnp.abs(out - ref))))

    print("KERNEL_OK")
</pallas_src>

<mosaic_0001>
module attributes {stable_mosaic.version = 11 : i64} {
  func.func @_fgcn1_fused_kernel(%arg0: memref<64x32xf32, #tpu.memory_space<vmem>>, %arg1: memref<64x64xf32, #tpu.memory_space<vmem>>, %arg2: memref<32x32xbf16, #tpu.memory_space<vmem>>, %arg3: memref<1x32xf32, #tpu.memory_space<vmem>>, %arg4: memref<32x128xbf16, #tpu.memory_space<vmem>>, %arg5: memref<1x128xf32, #tpu.memory_space<vmem>>, %arg6: memref<64x128xf32, #tpu.memory_space<vmem>>) attributes {dimension_semantics = [], scalar_prefetch = 0 : i64, scratch_operands = 0 : i64, tpu.core_type = #tpu.core_type<tc>} {
    %c0 = arith.constant 0 : index
    %c0_0 = arith.constant 0 : index
    %0 = vector.load %arg1[%c0, %c0_0] : memref<64x64xf32, #tpu.memory_space<vmem>>, vector<64x64xf32>
    %c0_1 = arith.constant 0 : index
    %c0_2 = arith.constant 0 : index
    %1 = vector.load %arg0[%c0_1, %c0_2] : memref<64x32xf32, #tpu.memory_space<vmem>>, vector<64x32xf32>
    %2 = arith.truncf %1 : vector<64x32xf32> to vector<64x32xbf16>
    %c0_3 = arith.constant 0 : index
    %c0_4 = arith.constant 0 : index
    %3 = vector.load %arg2[%c0_3, %c0_4] : memref<32x32xbf16, #tpu.memory_space<vmem>>, vector<32x32xbf16>
    %cst = arith.constant dense<0.000000e+00> : vector<64x32xf32>
    %4 = tpu.matmul %2, %3, %cst {dimension_numbers = #tpu.dot_dimension_numbers<[1], [0], [0], [1], [0, 0, 1, 1], [], []>} : vector<64x32xbf16>, vector<32x32xbf16>, vector<64x32xf32> -> vector<64x32xf32>
    %cst_5 = arith.constant dense<0.000000e+00> : vector<64x32xf32>
    %5 = tpu.matmul %0, %4, %cst_5 {dimension_numbers = #tpu.dot_dimension_numbers<[1], [0], [0], [1], [0, 0, 1, 1], [], []>} : vector<64x64xf32>, vector<64x32xf32>, vector<64x32xf32> -> vector<64x32xf32>
    %c0_6 = arith.constant 0 : index
    %c0_7 = arith.constant 0 : index
    %6 = vector.load %arg3[%c0_6, %c0_7] : memref<1x32xf32, #tpu.memory_space<vmem>>, vector<1x32xf32>
    %7 = vector.broadcast %6 : vector<1x32xf32> to vector<64x32xf32>
    %8 = arith.addf %5, %7 : vector<64x32xf32>
    %cst_8 = arith.constant 0.000000e+00 : f32
    %9 = vector.broadcast %cst_8 : f32 to vector<64x32xf32>
    %10 = arith.maximumf %8, %9 : vector<64x32xf32>
    %11 = arith.truncf %10 : vector<64x32xf32> to vector<64x32xbf16>
    %c0_9 = arith.constant 0 : index
    %c0_10 = arith.constant 0 : index
    %12 = vector.load %arg4[%c0_9, %c0_10] : memref<32x128xbf16, #tpu.memory_space<vmem>>, vector<32x128xbf16>
    %cst_11 = arith.constant dense<0.000000e+00> : vector<64x128xf32>
    %13 = tpu.matmul %11, %12, %cst_11 {dimension_numbers = #tpu.dot_dimension_numbers<[1], [0], [0], [1], [0, 0, 1, 1], [], []>} : vector<64x32xbf16>, vector<32x128xbf16>, vector<64x128xf32> -> vector<64x128xf32>
    %cst_12 = arith.constant dense<0.000000e+00> : vector<64x128xf32>
    %14 = tpu.matmul %0, %13, %cst_12 {dimension_numbers = #tpu.dot_dimension_numbers<[1], [0], [0], [1], [0, 0, 1, 1], [], []>} : vector<64x64xf32>, vector<64x128xf32>, vector<64x128xf32> -> vector<64x128xf32>
    %c0_13 = arith.constant 0 : index
    %c0_14 = arith.constant 0 : index
    %15 = vector.load %arg5[%c0_13, %c0_14] : memref<1x128xf32, #tpu.memory_space<vmem>>, vector<1x128xf32>
    %16 = vector.broadcast %15 : vector<1x128xf32> to vector<64x128xf32>
    %17 = arith.addf %14, %16 : vector<64x128xf32>
    %c0_15 = arith.constant 0 : index
    %c0_16 = arith.constant 0 : index
    %18 = vector.load %arg6[%c0_15, %c0_16] : memref<64x128xf32, #tpu.memory_space<vmem>>, vector<64x128xf32>
    tpu.vector_store %arg6[%c0_15, %c0_16], %17 {strides = array<i32>} : memref<64x128xf32, #tpu.memory_space<vmem>>, vector<64x128xf32>,
    return
  }
}

</mosaic_0001>

<llo_original>
// kernel: tpu_custom_call.1
$region0: #{tpu_custom_call.1}
  #allocation0 [shape = 'u32[]', space=smem, size = 0x4, offset = 0x4, fixed_abs, tag = 'smem constant byte address 0x4 - core index']
  #allocation1 [shape = 'u32[144,128]{1,0:T(1,128)}', space=vmem, size = 0x12000, scoped, tag = 'internal scratch']
  %s0 = inlined_call_operand.vmem [shape: f32[64,32], index: 0, kind: input, shape index: {}]
  %s1 = inlined_call_operand.vmem [shape: f32[64,64], index: 1, kind: input, shape index: {}]
  %s2 = inlined_call_operand.vmem [shape: bf16[32,32], index: 2, kind: input, shape index: {}]
  %s3 = inlined_call_operand.vmem [shape: f32[1,32], index: 3, kind: input, shape index: {}]
  %s4 = inlined_call_operand.vmem [shape: bf16[32,128], index: 4, kind: input, shape index: {}]
  %s5 = inlined_call_operand.vmem [shape: f32[1,128], index: 5, kind: input, shape index: {}]
  %s6 = inlined_call_operand.hbm [shape: f32[64,128], index: 6, kind: output, shape index: {}]
  %s7 = sld [smem:[#allocation0]]
  $region34: #{tpu_custom_call.1} parent=0
    _
  %s9 = ssub.s32 1, %s7
  %s10 = scalar_select 0, %s9, %s7
  $region1: #{tpu_custom_call.1} parent=0
    #allocation2 [shape = 'u8[32768]{0}', space=vmem, size = 0x8000, scoped, tag = 'output window, operand 0, single buffered']
    #allocation3 [shape = 's32[1]{0}', space=sflag, size = 0x4, scoped, tag = 'scoped memory for tpu_custom_call.1']
    %11 = vsyncpa [#allocation3], 0
    // Predicated region
    $region2: #{tpu_custom_call.1} parent=1 // pred_check
      _
    $region3: #{tpu_custom_call.1} parent=1 // pred_check_branch
      %13 = sbr.rel (0) target = $region5
    $region4: #{tpu_custom_call.1} parent=1 // pred_region
      _
    $region5: #{tpu_custom_call.1} parent=1 // pred_fallthru
      _
    // Predicated region
    $region6: #{tpu_custom_call.1} parent=1 // pred_check
      _
    $region7: #{tpu_custom_call.1} parent=1 // pred_check_branch
      %15 = sbr.rel (0) target = $region9
    $region8: #{tpu_custom_call.1} parent=1 // pred_region
      _
    $region9: #{tpu_custom_call.1} parent=1 // pred_fallthru
      _
    // Predicated region
    $region10: #{tpu_custom_call.1} parent=1 // pred_check
      _
    $region11: #{tpu_custom_call.1} parent=1 // pred_check_branch
      %17 = sbr.rel (0) target = $region13
    $region12: #{tpu_custom_call.1} parent=1 // pred_region
      _
    $region13: #{tpu_custom_call.1} parent=1 // pred_fallthru
      _
    // Predicated region
    $region14: #{tpu_custom_call.1} parent=1 // pred_check
      _
    $region15: #{tpu_custom_call.1} parent=1 // pred_check_branch
      %19 = sbr.rel (0) target = $region17
    $region16: #{tpu_custom_call.1} parent=1 // pred_region
      _
    $region17: #{tpu_custom_call.1} parent=1 // pred_fallthru
      _
    // Predicated region
    $region18: #{tpu_custom_call.1} parent=1 // pred_check
      _
    $region19: #{tpu_custom_call.1} parent=1 // pred_check_branch
      %21 = sbr.rel (0) target = $region21
    $region20: #{tpu_custom_call.1} parent=1 // pred_region
      _
    $region21: #{tpu_custom_call.1} parent=1 // pred_fallthru
      _
    // Predicated region
    $region22: #{tpu_custom_call.1} parent=1 // pred_check
      _
    $region23: #{tpu_custom_call.1} parent=1 // pred_check_branch
      %23 = sbr.rel (0) target = $region25
    $region24: #{tpu_custom_call.1} parent=1 // pred_region
      _
    $region25: #{tpu_custom_call.1} parent=1 // pred_fallthru
      _
    %v25 = vld [vmem:[%s1] sm:$0xff]
    %v26 = vld [vmem:[%s1 + $0x8] sm:$0xff]
    %v27 = vld [vmem:[%s1 + $0x10] sm:$0xff]
    %v28 = vld [vmem:[%s1 + $0x18] sm:$0xff]
    %v29 = vld [vmem:[%s1 + $0x20] sm:$0xff]
    %v30 = vld [vmem:[%s1 + $0x28] sm:$0xff]
    %v31 = vld [vmem:[%s1 + $0x30] sm:$0xff]
    %v32 = vld [vmem:[%s1 + $0x38] sm:$0xff]
    %v33 = vld [vmem:[%s0] sm:$0xff]
    %v34 = vld [vmem:[%s0 + $0x8] sm:$0xff]
    %v35 = vld [vmem:[%s0 + $0x10] sm:$0xff]
    %v36 = vld [vmem:[%s0 + $0x18] sm:$0xff]
    %v37 = vld [vmem:[%s0 + $0x20] sm:$0xff]
    %v38 = vld [vmem:[%s0 + $0x28] sm:$0xff]
    %v39 = vld [vmem:[%s0 + $0x30] sm:$0xff]
    %v40 = vld [vmem:[%s0 + $0x38] sm:$0xff]
    %v41 = vpack.c.bf16 %v34, %v33
    %v42 = vpack.c.bf16 %v36, %v35
    %v43 = vpack.c.bf16 %v38, %v37
    %v44 = vpack.c.bf16 %v40, %v39
    %v45 = vld [vmem:[%s2] sm:$0xf]
    %v46 = vld [vmem:[%s2 + $0x4] sm:$0xf]
    %v47 = vld [vmem:[%s2 + $0x8] sm:$0xf]
    %v48 = vld [vmem:[%s2 + $0xc] sm:$0xf]
    %v53 = vunpack.c.l.b16 %v45
    %v54 = vunpack.c.l.b16 %v46
    %v55 = vunpack.c.l.b16 %v47
    %v56 = vunpack.c.l.b16 %v48
    %v57 = vpack.c.b16 %v54, %v53
    %v58 = vpack.c.b16 %v56, %v55
    %vm61 = vcmask 261120
    %v63 = vsel %vm61, %v41, 0
    %v66 = vsel %vm61, %v42, 0
    %v69 = vsel %vm61, %v43, 0
    %v72 = vsel %vm61, %v44, 0
    %74 = vmatprep.subr.bf16.mxu0 0
    %75 = vmatpush1.bf16.msra.mxu0 %v57
    %76 = vmatprep.subr.bf16.mxu0 0
    %77 = vmatpush1.bf16.msra.mxu0 %v58
    %78 = vmatprep.subr.bf16.mxu0 0
    %79 = vmatpush1.bf16.msra.mxu0 0
    %80 = vmatprep.subr.bf16.mxu0 0
    %81 = vmatpush1.bf16.msra.mxu0 0
    %82 = vmatprep.subr.bf16.mxu0 0
    %83 = vmatpush1.bf16.msra.mxu0 0
    %84 = vmatprep.subr.bf16.mxu0 0
    %85 = vmatpush1.bf16.msra.mxu0 0
    %86 = vmatprep.subr.bf16.mxu0 0
    %87 = vmatpush1.bf16.msra.mxu0 0
    %88 = vmatprep.subr.bf16.mxu0 0
    %89 = vmatpush1.bf16.msra.mxu0 0
    %90 = vmatprep.subr.bf16.mxu0 0
    %91 = vmatpush1.bf16.msra.mxu0 0
    %92 = vmatprep.subr.bf16.mxu0 0
    %93 = vmatpush1.bf16.msra.mxu0 0
    %94 = vmatprep.subr.bf16.mxu0 0
    %95 = vmatpush1.bf16.msra.mxu0 0
    %96 = vmatprep.subr.bf16.mxu0 0
    %97 = vmatpush1.bf16.msra.mxu0 0
    %98 = vmatprep.subr.bf16.mxu0 0
    %99 = vmatpush1.bf16.msra.mxu0 0
    %100 = vmatprep.subr.bf16.mxu0 0
    %101 = vmatpush1.bf16.msra.mxu0 0
    %102 = vmatprep.subr.bf16.mxu0 0
    %103 = vmatpush1.bf16.msra.mxu0 0
    %104 = vmatprep.subr.bf16.mxu0 0
    %105 = vmatpush1.bf16.msra.mxu0 0
    %106 = vmatprep.mubr.bf16.mxu0 0
    %107 = vmatmul.mubr.bf16.gmra.mrb[0].mxu0 %v63
    %v108 = vpop.f32.mrb[0].mxu0
    %v109 = vadd.f32 0.0, %v108
    %v110 = vpop.f32.mrb[0].mxu0
    %v111 = vpop.f32.mrb[0].mxu0
    %v112 = vadd.f32 0.0, %v111
    %v113 = vpop.f32.mrb[0].mxu0
    %114 = vmatprep.mubr.bf16.mxu0 0
    %115 = vmatmul.mubr.bf16.gmra.mrb[0].mxu0 %v66
    %v116 = vpop.f32.mrb[0].mxu0
    %v117 = vadd.f32 0.0, %v116
    %v118 = vpop.f32.mrb[0].mxu0
    %v119 = vpop.f32.mrb[0].mxu0
    %v120 = vadd.f32 0.0, %v119
    %v121 = vpop.f32.mrb[0].mxu0
    %122 = vmatprep.mubr.bf16.mxu0 0
    %123 = vmatmul.mubr.bf16.gmra.mrb[0].mxu0 %v69
    %v124 = vpop.f32.mrb[0].mxu0
    %v125 = vadd.f32 0.0, %v124
    %v126 = vpop.f32.mrb[0].mxu0
    %v127 = vpop.f32.mrb[0].mxu0
    %v128 = vadd.f32 0.0, %v127
    %v129 = vpop.f32.mrb[0].mxu0
    %130 = vmatprep.mubr.bf16.mxu0 0
    %131 = vmatmul.mubr.bf16.gmra.mrb[0].mxu0 %v72
    %v132 = vpop.f32.mrb[0].mxu0
    %v133 = vadd.f32 0.0, %v132
    %v134 = vpop.f32.mrb[0].mxu0
    %v135 = vpop.f32.mrb[0].mxu0
    %v136 = vadd.f32 0.0, %v135
    %v137 = vpop.f32.mrb[0].mxu0
    %138 = vdwg.mxu0
    %v139 = vld [vmem:[%s3] sm:$0x1]
    %v141 = vlaneseq
    %v142 = vshrl.u32 %v141, 7
    %v143 = vsub.s32 0, %v142
    %v144 = vrot.slane %v139, %v143
    %vm146 = vcmask 523264
    %v148 = vsel %vm146, %v25, 0
    %v151 = vsel %vm146, %v26, 0
    %v154 = vsel %vm146, %v27, 0
    %v157 = vsel %vm146, %v28, 0
    %v160 = vsel %vm146, %v29, 0
    %v163 = vsel %vm146, %v30, 0
    %v166 = vsel %vm146, %v31, 0
    %v169 = vsel %vm146, %v32, 0
    %171 = vmatprep.subr.mxu0 0.0
    %172 = vmatpush1.msra.mxu0 %v109
    %173 = vmatprep.subr.mxu0 0.0
    %174 = vmatpush1.msra.mxu0 %v112
    %175 = vmatprep.subr.mxu0 0.0
    %176 = vmatpush1.msra.mxu0 %v117
    %177 = vmatprep.subr.mxu0 0.0
    %178 = vmatpush1.msra.mxu0 %v120
    %179 = vmatprep.subr.mxu0 0.0
    %180 = vmatpush1.msra.mxu0 %v125
    %181 = vmatprep.subr.mxu0 0.0
    %182 = vmatpush1.msra.mxu0 %v128
    %183 = vmatprep.subr.mxu0 0.0
    %184 = vmatpush1.msra.mxu0 %v133
    %185 = vmatprep.subr.mxu0 0.0
    %186 = vmatpush1.msra.mxu0 %v136
    %187 = vmatprep.subr.mxu0 0.0
    %188 = vmatpush1.msra.mxu0 0.0
    %189 = vmatprep.subr.mxu0 0.0
    %190 = vmatpush1.msra.mxu0 0.0
    %191 = vmatprep.subr.mxu0 0.0
    %192 = vmatpush1.msra.mxu0 0.0
    %193 = vmatprep.subr.mxu0 0.0
    %194 = vmatpush1.msra.mxu0 0.0
    %195 = vmatprep.subr.mxu0 0.0
    %196 = vmatpush1.msra.mxu0 0.0
    %197 = vmatprep.subr.mxu0 0.0
    %198 = vmatpush1.msra.mxu0 0.0
    %199 = vmatprep.subr.mxu0 0.0
    %200 = vmatpush1.msra.mxu0 0.0
    %201 = vmatprep.subr.mxu0 0.0
    %202 = vmatpush1.msra.mxu0 0.0
    %203 = vmatprep.subr.mxu0 0.0
    %204 = vmatpush1.msra.mxu0 0.0
    %205 = vmatprep.subr.mxu0 0.0
    %206 = vmatpush1.msra.mxu0 0.0
    %207 = vmatprep.subr.mxu0 0.0
    %208 = vmatpush1.msra.mxu0 0.0
    %209 = vmatprep.subr.mxu0 0.0
    %210 = vmatpush1.msra.mxu0 0.0
    %211 = vmatprep.subr.mxu0 0.0
    %212 = vmatpush1.msra.mxu0 0.0
    %213 = vmatprep.subr.mxu0 0.0
    %214 = vmatpush1.msra.mxu0 0.0
    %215 = vmatprep.subr.mxu0 0.0
    %216 = vmatpush1.msra.mxu0 0.0
    %217 = vmatprep.subr.mxu0 0.0
    %218 = vmatpush1.msra.mxu0 0.0
    %219 = vmatprep.subr.mxu0 0.0
    %220 = vmatpush1.msra.mxu0 0.0
    %221 = vmatprep.subr.mxu0 0.0
    %222 = vmatpush1.msra.mxu0 0.0
    %223 = vmatprep.subr.mxu0 0.0
    %224 = vmatpush1.msra.mxu0 0.0
    %225 = vmatprep.subr.mxu0 0.0
    %226 = vmatpush1.msra.mxu0 0.0
    %227 = vmatprep.subr.mxu0 0.0
    %228 = vmatpush1.msra.mxu0 0.0
    %229 = vmatprep.subr.mxu0 0.0
    %230 = vmatpush1.msra.mxu0 0.0
    %231 = vmatprep.subr.mxu0 0.0
    %232 = vmatpush1.msra.mxu0 0.0
    %233 = vmatprep.subr.mxu0 0.0
    %234 = vmatpush1.msra.mxu0 0.0
    %235 = vmatprep.mubr.f32.mxu0 0.0
    %236 = vmatmul.mubr.f32.gmra.mrb[0].mxu0 %v148
    %v237 = vpop.f32.mrb[0].mxu0
    %v238 = vadd.f32 %v144, %v237
    %v239 = vpop.f32.mrb[0].mxu0
    %240 = vmatprep.mubr.f32.mxu0 0.0
    %241 = vmatmul.mubr.f32.gmra.mrb[0].mxu0 %v151
    %v242 = vpop.f32.mrb[0].mxu0
    %v243 = vadd.f32 %v144, %v242
    %v244 = vpop.f32.mrb[0].mxu0
    %245 = vmatprep.mubr.f32.mxu0 0.0
    %246 = vmatmul.mubr.f32.gmra.mrb[0].mxu0 %v154
    %v247 = vpop.f32.mrb[0].mxu0
    %v248 = vadd.f32 %v144, %v247
    %v249 = vpop.f32.mrb[0].mxu0
    %250 = vmatprep.mubr.f32.mxu0 0.0
    %251 = vmatmul.mubr.f32.gmra.mrb[0].mxu0 %v157
    %v252 = vpop.f32.mrb[0].mxu0
    %v253 = vadd.f32 %v144, %v252
    %v254 = vpop.f32.mrb[0].mxu0
    %255 = vmatprep.mubr.f32.mxu0 0.0
    %256 = vmatmul.mubr.f32.gmra.mrb[0].mxu0 %v160
    %v257 = vpop.f32.mrb[0].mxu0
    %v258 = vadd.f32 %v144, %v257
    %v259 = vpop.f32.mrb[0].mxu0
    %260 = vmatprep.mubr.f32.mxu0 0.0
    %261 = vmatmul.mubr.f32.gmra.mrb[0].mxu0 %v163
    %v262 = vpop.f32.mrb[0].mxu0
    %v263 = vadd.f32 %v144, %v262
    %v264 = vpop.f32.mrb[0].mxu0
    %265 = vmatprep.mubr.f32.mxu0 0.0
    %266 = vmatmul.mubr.f32.gmra.mrb[0].mxu0 %v166
    %v267 = vpop.f32.mrb[0].mxu0
    %v268 = vadd.f32 %v144, %v267
    %v269 = vpop.f32.mrb[0].mxu0
    %270 = vmatprep.mubr.f32.mxu0 0.0
    %271 = vmatmul.mubr.f32.gmra.mrb[0].mxu0 %v169
    %v272 = vpop.f32.mrb[0].mxu0
    %v273 = vadd.f32 %v144, %v272
    %v274 = vpop.f32.mrb[0].mxu0
    %275 = vdwg.mxu0
    %v276 = vmax.f32 %v238, 0.0
    %v277 = vmax.f32 %v243, 0.0
    %v278 = vmax.f32 %v248, 0.0
    %v279 = vmax.f32 %v253, 0.0
    %v280 = vmax.f32 %v258, 0.0
    %v281 = vmax.f32 %v263, 0.0
    %v282 = vmax.f32 %v268, 0.0
    %v283 = vmax.f32 %v273, 0.0
    %v284 = vpack.c.bf16 %v277, %v276
    %v285 = vpack.c.bf16 %v279, %v278
    %v286 = vpack.c.bf16 %v281, %v280
    %v287 = vpack.c.bf16 %v283, %v282
    %v288 = vld [vmem:[%s4] sm:$0xf]
    %v289 = vld [vmem:[%s4 + $0x4] sm:$0xf]
    %v290 = vld [vmem:[%s4 + $0x8] sm:$0xf]
    %v291 = vld [vmem:[%s4 + $0xc] sm:$0xf]
    %v296 = vunpack.c.l.b16 %v288
    %v297 = vunpack.c.l.b16 %v289
    %v298 = vunpack.c.l.b16 %v290
    %v299 = vunpack.c.l.b16 %v291
    %v300 = vpack.c.b16 %v297, %v296
    %v301 = vpack.c.b16 %v299, %v298
    %v305 = vsel %vm61, %v284, 0
    %v308 = vsel %vm61, %v285, 0
    %v311 = vsel %vm61, %v286, 0
    %v314 = vsel %vm61, %v287, 0
    %316 = vmatprep.subr.bf16.mxu0 0
    %317 = vmatpush1.bf16.msra.mxu0 %v300
    %318 = vmatprep.subr.bf16.mxu0 0
    %319 = vmatpush1.bf16.msra.mxu0 %v301
    %320 = vmatprep.subr.bf16.mxu0 0
    %321 = vmatpush1.bf16.msra.mxu0 0
    %322 = vmatprep.subr.bf16.mxu0 0
    %323 = vmatpush1.bf16.msra.mxu0 0
    %324 = vmatprep.subr.bf16.mxu0 0
    %325 = vmatpush1.bf16.msra.mxu0 0
    %326 = vmatprep.subr.bf16.mxu0 0
    %327 = vmatpush1.bf16.msra.mxu0 0
    %328 = vmatprep.subr.bf16.mxu0 0
    %329 = vmatpush1.bf16.msra.mxu0 0
    %330 = vmatprep.subr.bf16.mxu0 0
    %331 = vmatpush1.bf16.msra.mxu0 0
    %332 = vmatprep.subr.bf16.mxu0 0
    %333 = vmatpush1.bf16.msra.mxu0 0
    %334 = vmatprep.subr.bf16.mxu0 0
    %335 = vmatpush1.bf16.msra.mxu0 0
    %336 = vmatprep.subr.bf16.mxu0 0
    %337 = vmatpush1.bf16.msra.mxu0 0
    %338 = vmatprep.subr.bf16.mxu0 0
    %339 = vmatpush1.bf16.msra.mxu0 0
    %340 = vmatprep.subr.bf16.mxu0 0
    %341 = vmatpush1.bf16.msra.mxu0 0
    %342 = vmatprep.subr.bf16.mxu0 0
    %343 = vmatpush1.bf16.msra.mxu0 0
    %344 = vmatprep.subr.bf16.mxu0 0
    %345 = vmatpush1.bf16.msra.mxu0 0
    %346 = vmatprep.subr.bf16.mxu0 0
    %347 = vmatpush1.bf16.msra.mxu0 0
    %348 = vmatprep.mubr.bf16.mxu0 0
    %349 = vmatmul.mubr.bf16.gmra.mrb[0].mxu0 %v305
    %v350 = vpop.f32.mrb[0].mxu0
    %v351 = vadd.f32 0.0, %v350
    %v352 = vpop.f32.mrb[0].mxu0
    %v353 = vpop.f32.mrb[0].mxu0
    %v354 = vadd.f32 0.0, %v353
    %v355 = vpop.f32.mrb[0].mxu0
    %356 = vmatprep.mubr.bf16.mxu0 0
    %357 = vmatmul.mubr.bf16.gmra.mrb[0].mxu0 %v308
    %v358 = vpop.f32.mrb[0].mxu0
    %v359 = vadd.f32 0.0, %v358
    %v360 = vpop.f32.mrb[0].mxu0
    %v361 = vpop.f32.mrb[0].mxu0
    %v362 = vadd.f32 0.0, %v361
    %v363 = vpop.f32.mrb[0].mxu0
    %364 = vmatprep.mubr.bf16.mxu0 0
    %365 = vmatmul.mubr.bf16.gmra.mrb[0].mxu0 %v311
    %v366 = vpop.f32.mrb[0].mxu0
    %v367 = vadd.f32 0.0, %v366
    %v368 = vpop.f32.mrb[0].mxu0
    %v369 = vpop.f32.mrb[0].mxu0
    %v370 = vadd.f32 0.0, %v369
    %v371 = vpop.f32.mrb[0].mxu0
    %372 = vmatprep.mubr.bf16.mxu0 0
    %373 = vmatmul.mubr.bf16.gmra.mrb[0].mxu0 %v314
    %v374 = vpop.f32.mrb[0].mxu0
    %v375 = vadd.f32 0.0, %v374
    %v376 = vpop.f32.mrb[0].mxu0
    %v377 = vpop.f32.mrb[0].mxu0
    %v378 = vadd.f32 0.0, %v377
    %v379 = vpop.f32.mrb[0].mxu0
    %380 = vdwg.mxu0
    %v381 = vld [vmem:[%s5] sm:$0x1]
    %v383 = vlaneseq
    %v384 = vshrl.u32 %v383, 7
    %v385 = vsub.s32 0, %v384
    %v386 = vrot.slane %v381, %v385
    %388 = vmatprep.subr.mxu0 0.0
    %389 = vmatpush1.msra.mxu0 %v351
    %390 = vmatprep.subr.mxu0 0.0
    %391 = vmatpush1.msra.mxu0 %v354
    %392 = vmatprep.subr.mxu0 0.0
    %393 = vmatpush1.msra.mxu0 %v359
    %394 = vmatprep.subr.mxu0 0.0
    %395 = vmatpush1.msra.mxu0 %v362
    %396 = vmatprep.subr.mxu0 0.0
    %397 = vmatpush1.msra.mxu0 %v367
    %398 = vmatprep.subr.mxu0 0.0
    %399 = vmatpush1.msra.mxu0 %v370
    %400 = vmatprep.subr.mxu0 0.0
    %401 = vmatpush1.msra.mxu0 %v375
    %402 = vmatprep.subr.mxu0 0.0
    %403 = vmatpush1.msra.mxu0 %v378
    %404 = vmatprep.subr.mxu0 0.0
    %405 = vmatpush1.msra.mxu0 0.0
    %406 = vmatprep.subr.mxu0 0.0
    %407 = vmatpush1.msra.mxu0 0.0
    %408 = vmatprep.subr.mxu0 0.0
    %409 = vmatpush1.msra.mxu0 0.0
    %410 = vmatprep.subr.mxu0 0.0
    %411 = vmatpush1.msra.mxu0 0.0
    %412 = vmatprep.subr.mxu0 0.0
    %413 = vmatpush1.msra.mxu0 0.0
    %414 = vmatprep.subr.mxu0 0.0
    %415 = vmatpush1.msra.mxu0 0.0
    %416 = vmatprep.subr.mxu0 0.0
    %417 = vmatpush1.msra.mxu0 0.0
    %418 = vmatprep.subr.mxu0 0.0
    %419 = vmatpush1.msra.mxu0 0.0
    %420 = vmatprep.subr.mxu0 0.0
    %421 = vmatpush1.msra.mxu0 0.0
    %422 = vmatprep.subr.mxu0 0.0
    %423 = vmatpush1.msra.mxu0 0.0
    %424 = vmatprep.subr.mxu0 0.0
    %425 = vmatpush1.msra.mxu0 0.0
    %426 = vmatprep.subr.mxu0 0.0
    %427 = vmatpush1.msra.mxu0 0.0
    %428 = vmatprep.subr.mxu0 0.0
    %429 = vmatpush1.msra.mxu0 0.0
    %430 = vmatprep.subr.mxu0 0.0
    %431 = vmatpush1.msra.mxu0 0.0
    %432 = vmatprep.subr.mxu0 0.0
    %433 = vmatpush1.msra.mxu0 0.0
    %434 = vmatprep.subr.mxu0 0.0
    %435 = vmatpush1.msra.mxu0 0.0
    %436 = vmatprep.subr.mxu0 0.0
    %437 = vmatpush1.msra.mxu0 0.0
    %438 = vmatprep.subr.mxu0 0.0
    %439 = vmatpush1.msra.mxu0 0.0
    %440 = vmatprep.subr.mxu0 0.0
    %441 = vmatpush1.msra.mxu0 0.0
    %442 = vmatprep.subr.mxu0 0.0
    %443 = vmatpush1.msra.mxu0 0.0
    %444 = vmatprep.subr.mxu0 0.0
    %445 = vmatpush1.msra.mxu0 0.0
    %446 = vmatprep.subr.mxu0 0.0
    %447 = vmatpush1.msra.mxu0 0.0
    %448 = vmatprep.subr.mxu0 0.0
    %449 = vmatpush1.msra.mxu0 0.0
    %450 = vmatprep.subr.mxu0 0.0
    %451 = vmatpush1.msra.mxu0 0.0
    %452 = vmatprep.mubr.f32.mxu0 0.0
    %453 = vmatmul.mubr.f32.gmra.mrb[0].mxu0 %v148
    %v454 = vpop.f32.mrb[0].mxu0
    %v455 = vadd.f32 %v386, %v454
    %v456 = vpop.f32.mrb[0].mxu0
    %457 = vmatprep.mubr.f32.mxu0 0.0
    %458 = vmatmul.mubr.f32.gmra.mrb[0].mxu0 %v151
    %v459 = vpop.f32.mrb[0].mxu0
    %v460 = vadd.f32 %v386, %v459
    %v461 = vpop.f32.mrb[0].mxu0
    %462 = vmatprep.mubr.f32.mxu0 0.0
    %463 = vmatmul.mubr.f32.gmra.mrb[0].mxu0 %v154
    %v464 = vpop.f32.mrb[0].mxu0
    %v465 = vadd.f32 %v386, %v464
    %v466 = vpop.f32.mrb[0].mxu0
    %467 = vmatprep.mubr.f32.mxu0 0.0
    %468 = vmatmul.mubr.f32.gmra.mrb[0].mxu0 %v157
    %v469 = vpop.f32.mrb[0].mxu0
    %v470 = vadd.f32 %v386, %v469
    %v471 = vpop.f32.mrb[0].mxu0
    %472 = vmatprep.mubr.f32.mxu0 0.0
    %473 = vmatmul.mubr.f32.gmra.mrb[0].mxu0 %v160
    %v474 = vpop.f32.mrb[0].mxu0
    %v475 = vadd.f32 %v386, %v474
    %v476 = vpop.f32.mrb[0].mxu0
    %477 = vmatprep.mubr.f32.mxu0 0.0
    %478 = vmatmul.mubr.f32.gmra.mrb[0].mxu0 %v163
    %v479 = vpop.f32.mrb[0].mxu0
    %v480 = vadd.f32 %v386, %v479
    %v481 = vpop.f32.mrb[0].mxu0
    %482 = vmatprep.mubr.f32.mxu0 0.0
    %483 = vmatmul.mubr.f32.gmra.mrb[0].mxu0 %v166
    %v484 = vpop.f32.mrb[0].mxu0
    %v485 = vadd.f32 %v386, %v484
    %v486 = vpop.f32.mrb[0].mxu0
    %487 = vmatprep.mubr.f32.mxu0 0.0
    %488 = vmatmul.mubr.f32.gmra.mrb[0].mxu0 %v169
    %v489 = vpop.f32.mrb[0].mxu0
    %v490 = vadd.f32 %v386, %v489
    %v491 = vpop.f32.mrb[0].mxu0
    %492 = vdwg.mxu0
    %493 = vst [vmem:[#allocation2] sm:$0xff] %v455
    %494 = vst [vmem:[#allocation2 + $0x8] sm:$0xff] %v460
    %495 = vst [vmem:[#allocation2 + $0x10] sm:$0xff] %v465
    %496 = vst [vmem:[#allocation2 + $0x18] sm:$0xff] %v470
    %497 = vst [vmem:[#allocation2 + $0x20] sm:$0xff] %v475
    %498 = vst [vmem:[#allocation2 + $0x28] sm:$0xff] %v480
    %499 = vst [vmem:[#allocation2 + $0x30] sm:$0xff] %v485
    %500 = vst [vmem:[#allocation2 + $0x38] sm:$0xff] %v490
    // Predicated region
    $region26: #{tpu_custom_call.1} parent=1 // pred_check
      _
    $region27: #{tpu_custom_call.1} parent=1 // pred_check_branch
      %502 = sbr.rel (0) target = $region29
    $region28: #{tpu_custom_call.1} parent=1 // pred_region
      %s504 = ssub.s32 1024, 1024
      %505 = vsyncadd [#allocation3], %s504
      %s506 = sshll.u32 [#allocation2], 4
      %s507 = int_to_ptr.vmem [resolvable:$true] %s506
      %512 = dma.vmem_to_hbm [thread:$0]  %s507, 1024, %s6, [#allocation3], 128, 128, 8
    $region29: #{tpu_custom_call.1} parent=1 // pred_fallthru
      _
    // Predicated region
    $region30: #{tpu_custom_call.1} parent=1 // pred_check
      _
    $region31: #{tpu_custom_call.1} parent=1 // pred_check_branch
      %514 = sbr.rel (0) target = $region33
    $region32: #{tpu_custom_call.1} parent=1 // pred_region
      %515 = dma.done [#allocation3], 1024
    $region33: #{tpu_custom_call.1} parent=1 // pred_fallthru
      _
    %516 = vsyncpa [#allocation3], 1

</llo_original>
